<compile_context>
chip_gen: v5e
topology: v5e:2x2
jax: 0.10.0
libtpu: 0.0.40
codegen_flags: <defaults>
</compile_context>

<pallas_src>
import jax
import jax.numpy as jnp
from jax.experimental import pallas as pl
from jax.experimental.pallas import tpu as pltpu

H1_RAW, H2_RAW = 400, 300
LANE = 128
TB_TARGET = 1024  # tunable batch-tile target (sweep 512..2048); keeps VMEM < ~12 MiB


def _round_up(x, m):
    return (x + m - 1) // m * m


def _cdiv(a, b):
    return -(-a // b)


def _choose_tb(B):
    """Batch tile: >=2 grid steps for v7x megacore, 16-row (bf16 sublane) rounding,
    minimal batch padding, ~TB_TARGET rows per step for large B."""
    if B <= 32:
        return _round_up(B, 16)           # tiny batch: single grid step
    n_steps = max(2, _cdiv(B, TB_TARGET))
    return _round_up(_cdiv(B, n_steps), 16)


def _elu(x):
    # ELU(alpha=1): x if x > 0 else exp(x) - 1   (exp argument clamped for safety)
    return jnp.where(x > 0, x, jnp.exp(jnp.minimum(x, 0.0)) - 1.0)


def actor_kernel(x_ref,
                 w1_ref, s1_ref, b1_ref,
                 w2_ref, s2_ref, b2_ref,
                 w3_ref, s3_ref, b3_ref,
                 o_ref):
    # Cast input to bf16 in-kernel (no wrapper-side HBM pad/cast pass).
    x = x_ref[...].astype(jnp.bfloat16)

    # Layer 1: Linear (bf16 MXU, f32 acc) -> BN scale/shift in f32 -> ELU.
    h1 = jnp.dot(x, w1_ref[...], preferred_element_type=jnp.float32)
    h1 = _elu(h1 * s1_ref[...] + b1_ref[...])

    # Layer 2 (Dropout = identity in eval mode).
    h2 = jnp.dot(h1.astype(jnp.bfloat16), w2_ref[...],
                 preferred_element_type=jnp.float32)
    h2 = _elu(h2 * s2_ref[...] + b2_ref[...])

    # Layer 3 + tanh.
    h3 = jnp.dot(h2.astype(jnp.bfloat16), w3_ref[...],
                 preferred_element_type=jnp.float32)
    h3 = h3 * s3_ref[...] + b3_ref[...]

    # bf16 store: tanh is in [-1,1], halves the output DMA bytes.
    o_ref[...] = jnp.tanh(h3).astype(o_ref.dtype)


def actor_forward(x, kp, action_size):
    """x: (B, state_size) f32.  kp: padded bf16 weights + f32 scales/shifts."""
    B, S = x.shape
    H1 = kp["w1"].shape[1]
    H2 = kp["w2"].shape[1]
    Ap = kp["w3"].shape[1]

    TB = _choose_tb(B)
    Bp = _round_up(B, TB)
    if Bp != B:
        x = jnp.pad(x, ((0, Bp - B), (0, 0)))   # batch-only zero pad (cheap)

    act_map = lambda i: (i, 0)   # batch-tiled activations / output
    res_map = lambda i: (0, 0)   # VMEM-resident weights & scale/shift across the loop

    n_grid = Bp // TB
    weight_bytes = sum(int(w.size) * 2 for w in (kp["w1"], kp["w2"], kp["w3"]))
    vec_bytes = sum(int(v.size) * 4 for v in
                    (kp["s1"], kp["b1"], kp["s2"], kp["b2"], kp["s3"], kp["b3"]))
    cost = pl.CostEstimate(
        flops=2 * Bp * (S * H1 + H1 * H2 + H2 * Ap),
        transcendentals=Bp * (H1 + H2 + Ap),
        bytes_accessed=Bp * S * 4 + Bp * Ap * 2 + weight_bytes + vec_bytes,
    )

    out_padded = pl.pallas_call(
        actor_kernel,
        out_shape=jax.ShapeDtypeStruct((Bp, Ap), jnp.bfloat16),
        grid=(n_grid,),
        in_specs=[
            pl.BlockSpec((TB, S), act_map),      # S = full last dim -> legal block
            pl.BlockSpec((S, H1), res_map),
            pl.BlockSpec((1, H1), res_map),
            pl.BlockSpec((1, H1), res_map),
            pl.BlockSpec((H1, H2), res_map),
            pl.BlockSpec((1, H2), res_map),
            pl.BlockSpec((1, H2), res_map),
            pl.BlockSpec((H2, Ap), res_map),
            pl.BlockSpec((1, Ap), res_map),
            pl.BlockSpec((1, Ap), res_map),
        ],
        out_specs=pl.BlockSpec((TB, Ap), act_map),
        cost_estimate=cost,
        compiler_params=pltpu.CompilerParams(
            # Batch axis is embarrassingly parallel -> megacore sharding on v7x.
            dimension_semantics=("parallel",)),
    )(x,
      kp["w1"], kp["s1"], kp["b1"],
      kp["w2"], kp["s2"], kp["b2"],
      kp["w3"], kp["s3"], kp["b3"])

    return out_padded[:B, :action_size].astype(jnp.float32)


# ----------------------------------------------------------------------------
# Parameter construction (PyTorch-equivalent f32 params) and kernel packing.
# ----------------------------------------------------------------------------

def make_raw_params(key, state_size, action_size):
    """f32 parameters matching the PyTorch module (Linear weights stored (in, out))."""
    keys = jax.random.split(key, 15)

    def lin(k, fan_in, fan_out):
        # PyTorch default Linear init: U(-1/sqrt(fan_in), 1/sqrt(fan_in)).
        bound = 1.0 / jnp.sqrt(jnp.float32(fan_in))
        return jax.random.uniform(k, (fan_in, fan_out), jnp.float32,
                                  minval=-bound, maxval=bound)

    def bn(ks, n):
        gamma = 1.0 + 0.1 * jax.random.normal(ks[0], (n,), jnp.float32)
        beta = 0.1 * jax.random.normal(ks[1], (n,), jnp.float32)
        mean = 0.1 * jax.random.normal(ks[2], (n,), jnp.float32)
        var = jnp.abs(1.0 + 0.1 * jax.random.normal(ks[3], (n,), jnp.float32))
        return (gamma, beta, mean, var)

    return dict(
        w1=lin(keys[0], state_size, H1_RAW),
        w2=lin(keys[1], H1_RAW, H2_RAW),
        w3=lin(keys[2], H2_RAW, action_size),
        bn1=bn(keys[3:7], H1_RAW),
        bn2=bn(keys[7:11], H2_RAW),
        bn3=bn(keys[11:15], action_size),
    )


def _fold_bn(gamma, beta, mean, var, eps=1e-5):
    scale = gamma / jnp.sqrt(var + eps)
    shift = beta - mean * scale
    return scale, shift


def _pad2(a, rows, cols):
    out = jnp.zeros((rows, cols), a.dtype)
    return out.at[:a.shape[0], :a.shape[1]].set(a)


def prepare_kernel_params(raw):
    """Pad feature dims to lane multiples, weights bf16, BN scale/shift kept in f32."""
    s1, b1 = _fold_bn(*raw["bn1"])
    s2, b2 = _fold_bn(*raw["bn2"])
    s3, b3 = _fold_bn(*raw["bn3"])

    S = raw["w1"].shape[0]
    A = raw["w3"].shape[1]
    H1 = _round_up(H1_RAW, LANE)   # 400     -> 512
    H2 = _round_up(H2_RAW, LANE)   # 300     -> 384
    Ap = _round_up(A, LANE)        # actions -> 128 multiple

    # Weights kept at their raw values in bf16 (scale applied in-kernel in f32).
    # Contraction dim of w1 stays at the raw state size (no HBM pad of x needed).
    w1 = _pad2(raw["w1"], S, H1).astype(jnp.bfloat16)
    w2 = _pad2(raw["w2"], H1, H2).astype(jnp.bfloat16)
    w3 = _pad2(raw["w3"], H2, Ap).astype(jnp.bfloat16)

    # Padded scale/shift are zero => padded activation columns stay 0 (ELU(0)=0).
    s1p = _pad2(s1[None, :].astype(jnp.float32), 1, H1)
    s2p = _pad2(s2[None, :].astype(jnp.float32), 1, H2)
    s3p = _pad2(s3[None, :].astype(jnp.float32), 1, Ap)
    b1p = _pad2(b1[None, :].astype(jnp.float32), 1, H1)
    b2p = _pad2(b2[None, :].astype(jnp.float32), 1, H2)
    b3p = _pad2(b3[None, :].astype(jnp.float32), 1, Ap)

    return dict(w1=w1, s1=s1p, b1=b1p,
                w2=w2, s2=s2p, b2=b2p,
                w3=w3, s3=s3p, b3=b3p)


def actor_reference(x, raw):
    """Pure-JAX f32 reference (eval-mode BatchNorm, Dropout = identity)."""
    def bn(h, stats, eps=1e-5):
        gamma, beta, mean, var = stats
        return (h - mean) / jnp.sqrt(var + eps) * gamma + beta

    h1 = _elu(bn(x @ raw["w1"], raw["bn1"]))
    h2 = _elu(bn(h1 @ raw["w2"], raw["bn2"]))
    h3 = bn(h2 @ raw["w3"], raw["bn3"])
    return jnp.tanh(h3)


if __name__ == "__main__":
    key = jax.random.PRNGKey(0)
    k_x, k_p = jax.random.split(key)

    batch = 8
    state_size = 32
    action_size = 8

    x = jax.random.normal(k_x, (batch, state_size), jnp.float32)
    raw = make_raw_params(k_p, state_size, action_size)
    kp = prepare_kernel_params(raw)

    out = actor_forward(x, kp, action_size)
    out = jax.block_until_ready(out)

    ref = actor_reference(x, raw)
    assert out.shape == (batch, action_size)
    # bf16 weights/activations/output (f32 accumulation) vs pure-f32 reference.
    assert jnp.allclose(out, ref, atol=2.5e-2, rtol=0.0), "mismatch vs reference"

    print("KERNEL_OK")
</pallas_src>

<mosaic_0001>
module attributes {stable_mosaic.version = 11 : i64} {
  func.func @actor_kernel(%arg0: i32, %arg1: memref<16x32xf32, #tpu.memory_space<vmem>>, %arg2: memref<32x512xbf16, #tpu.memory_space<vmem>>, %arg3: memref<1x512xf32, #tpu.memory_space<vmem>>, %arg4: memref<1x512xf32, #tpu.memory_space<vmem>>, %arg5: memref<512x384xbf16, #tpu.memory_space<vmem>>, %arg6: memref<1x384xf32, #tpu.memory_space<vmem>>, %arg7: memref<1x384xf32, #tpu.memory_space<vmem>>, %arg8: memref<384x128xbf16, #tpu.memory_space<vmem>>, %arg9: memref<1x128xf32, #tpu.memory_space<vmem>>, %arg10: memref<1x128xf32, #tpu.memory_space<vmem>>, %arg11: memref<16x128xbf16, #tpu.memory_space<vmem>>) attributes {dimension_semantics = [#tpu.dimension_semantics<parallel>], iteration_bounds = array<i64: 1>, scalar_prefetch = 0 : i64, scratch_operands = 0 : i64, tpu.core_type = #tpu.core_type<tc>, window_params = [{transform_indices = @transform_0, window_bounds = array<i64: 16, 32>}, {pipeline_mode = #tpu.pipeline_mode<synchronous>, transform_indices = @transform_1, window_bounds = array<i64: 32, 512>}, {pipeline_mode = #tpu.pipeline_mode<synchronous>, transform_indices = @transform_2, window_bounds = array<i64: 1, 512>}, {pipeline_mode = #tpu.pipeline_mode<synchronous>, transform_indices = @transform_3, window_bounds = array<i64: 1, 512>}, {pipeline_mode = #tpu.pipeline_mode<synchronous>, transform_indices = @transform_4, window_bounds = array<i64: 512, 384>}, {pipeline_mode = #tpu.pipeline_mode<synchronous>, transform_indices = @transform_5, window_bounds = array<i64: 1, 384>}, {pipeline_mode = #tpu.pipeline_mode<synchronous>, transform_indices = @transform_6, window_bounds = array<i64: 1, 384>}, {pipeline_mode = #tpu.pipeline_mode<synchronous>, transform_indices = @transform_7, window_bounds = array<i64: 384, 128>}, {pipeline_mode = #tpu.pipeline_mode<synchronous>, transform_indices = @transform_8, window_bounds = array<i64: 1, 128>}, {pipeline_mode = #tpu.pipeline_mode<synchronous>, transform_indices = @transform_9, window_bounds = array<i64: 1, 128>}, {transform_indices = @transform_10, window_bounds = array<i64: 16, 128>}]} {
    %c0 = arith.constant 0 : index
    %c0_0 = arith.constant 0 : index
    %0 = vector.load %arg1[%c0, %c0_0] : memref<16x32xf32, #tpu.memory_space<vmem>>, vector<16x32xf32>
    %1 = arith.truncf %0 : vector<16x32xf32> to vector<16x32xbf16>
    %c0_1 = arith.constant 0 : index
    %c0_2 = arith.constant 0 : index
    %2 = vector.load %arg2[%c0_1, %c0_2] : memref<32x512xbf16, #tpu.memory_space<vmem>>, vector<32x512xbf16>
    %cst = arith.constant dense<0.000000e+00> : vector<16x512xf32>
    %3 = tpu.matmul %1, %2, %cst {dimension_numbers = #tpu.dot_dimension_numbers<[1], [0], [0], [1], [0, 0, 1, 1], [], []>} : vector<16x32xbf16>, vector<32x512xbf16>, vector<16x512xf32> -> vector<16x512xf32>
    %c0_3 = arith.constant 0 : index
    %c0_4 = arith.constant 0 : index
    %4 = vector.load %arg3[%c0_3, %c0_4] : memref<1x512xf32, #tpu.memory_space<vmem>>, vector<1x512xf32>
    %5 = vector.broadcast %4 : vector<1x512xf32> to vector<16x512xf32>
    %6 = arith.mulf %3, %5 : vector<16x512xf32>
    %c0_5 = arith.constant 0 : index
    %c0_6 = arith.constant 0 : index
    %7 = vector.load %arg4[%c0_5, %c0_6] : memref<1x512xf32, #tpu.memory_space<vmem>>, vector<1x512xf32>
    %8 = vector.broadcast %7 : vector<1x512xf32> to vector<16x512xf32>
    %9 = arith.addf %6, %8 : vector<16x512xf32>
    %cst_7 = arith.constant 0.000000e+00 : f32
    %10 = vector.broadcast %cst_7 : f32 to vector<16x512xf32>
    %11 = arith.cmpf ogt, %9, %10 : vector<16x512xf32>
    %cst_8 = arith.constant 0.000000e+00 : f32
    %12 = vector.broadcast %cst_8 : f32 to vector<16x512xf32>
    %13 = arith.minimumf %9, %12 : vector<16x512xf32>
    %14 = math.exp %13 : vector<16x512xf32>
    %cst_9 = arith.constant 1.000000e+00 : f32
    %15 = vector.broadcast %cst_9 : f32 to vector<16x512xf32>
    %16 = arith.subf %14, %15 : vector<16x512xf32>
    %17 = arith.select %11, %9, %16 : vector<16x512xi1>, vector<16x512xf32>
    %18 = arith.truncf %17 : vector<16x512xf32> to vector<16x512xbf16>
    %c0_10 = arith.constant 0 : index
    %c0_11 = arith.constant 0 : index
    %19 = vector.load %arg5[%c0_10, %c0_11] : memref<512x384xbf16, #tpu.memory_space<vmem>>, vector<512x384xbf16>
    %cst_12 = arith.constant dense<0.000000e+00> : vector<16x384xf32>
    %20 = tpu.matmul %18, %19, %cst_12 {dimension_numbers = #tpu.dot_dimension_numbers<[1], [0], [0], [1], [0, 0, 1, 1], [], []>} : vector<16x512xbf16>, vector<512x384xbf16>, vector<16x384xf32> -> vector<16x384xf32>
    %c0_13 = arith.constant 0 : index
    %c0_14 = arith.constant 0 : index
    %21 = vector.load %arg6[%c0_13, %c0_14] : memref<1x384xf32, #tpu.memory_space<vmem>>, vector<1x384xf32>
    %22 = vector.broadcast %21 : vector<1x384xf32> to vector<16x384xf32>
    %23 = arith.mulf %20, %22 : vector<16x384xf32>
    %c0_15 = arith.constant 0 : index
    %c0_16 = arith.constant 0 : index
    %24 = vector.load %arg7[%c0_15, %c0_16] : memref<1x384xf32, #tpu.memory_space<vmem>>, vector<1x384xf32>
    %25 = vector.broadcast %24 : vector<1x384xf32> to vector<16x384xf32>
    %26 = arith.addf %23, %25 : vector<16x384xf32>
    %cst_17 = arith.constant 0.000000e+00 : f32
    %27 = vector.broadcast %cst_17 : f32 to vector<16x384xf32>
    %28 = arith.cmpf ogt, %26, %27 : vector<16x384xf32>
    %cst_18 = arith.constant 0.000000e+00 : f32
    %29 = vector.broadcast %cst_18 : f32 to vector<16x384xf32>
    %30 = arith.minimumf %26, %29 : vector<16x384xf32>
    %31 = math.exp %30 : vector<16x384xf32>
    %cst_19 = arith.constant 1.000000e+00 : f32
    %32 = vector.broadcast %cst_19 : f32 to vector<16x384xf32>
    %33 = arith.subf %31, %32 : vector<16x384xf32>
    %34 = arith.select %28, %26, %33 : vector<16x384xi1>, vector<16x384xf32>
    %35 = arith.truncf %34 : vector<16x384xf32> to vector<16x384xbf16>
    %c0_20 = arith.constant 0 : index
    %c0_21 = arith.constant 0 : index
    %36 = vector.load %arg8[%c0_20, %c0_21] : memref<384x128xbf16, #tpu.memory_space<vmem>>, vector<384x128xbf16>
    %cst_22 = arith.constant dense<0.000000e+00> : vector<16x128xf32>
    %37 = tpu.matmul %35, %36, %cst_22 {dimension_numbers = #tpu.dot_dimension_numbers<[1], [0], [0], [1], [0, 0, 1, 1], [], []>} : vector<16x384xbf16>, vector<384x128xbf16>, vector<16x128xf32> -> vector<16x128xf32>
    %c0_23 = arith.constant 0 : index
    %c0_24 = arith.constant 0 : index
    %38 = vector.load %arg9[%c0_23, %c0_24] : memref<1x128xf32, #tpu.memory_space<vmem>>, vector<1x128xf32>
    %39 = vector.broadcast %38 : vector<1x128xf32> to vector<16x128xf32>
    %40 = arith.mulf %37, %39 : vector<16x128xf32>
    %c0_25 = arith.constant 0 : index
    %c0_26 = arith.constant 0 : index
    %41 = vector.load %arg10[%c0_25, %c0_26] : memref<1x128xf32, #tpu.memory_space<vmem>>, vector<1x128xf32>
    %42 = vector.broadcast %41 : vector<1x128xf32> to vector<16x128xf32>
    %43 = arith.addf %40, %42 : vector<16x128xf32>
    %44 = math.tanh %43 : vector<16x128xf32>
    %45 = arith.truncf %44 : vector<16x128xf32> to vector<16x128xbf16>
    %c0_27 = arith.constant 0 : index
    %c0_28 = arith.constant 0 : index
    %46 = vector.load %arg11[%c0_27, %c0_28] : memref<16x128xbf16, #tpu.memory_space<vmem>>, vector<16x128xbf16>
    tpu.vector_store %arg11[%c0_27, %c0_28], %45 {strides = array<i32>} : memref<16x128xbf16, #tpu.memory_space<vmem>>, vector<16x128xbf16>,
    return
  }
  func.func @transform_0(%arg0: i32) -> (i32, i32) {
    %c0_i32 = arith.constant 0 : i32
    %c0_i32_0 = arith.constant 0 : i32
    return %arg0, %c0_i32 : i32, i32
  }
  func.func @transform_1(%arg0: i32) -> (i32, i32) {
    %c0_i32 = arith.constant 0 : i32
    %c0_i32_0 = arith.constant 0 : i32
    %c0_i32_1 = arith.constant 0 : i32
    return %c0_i32, %c0_i32_0 : i32, i32
  }
  func.func @transform_2(%arg0: i32) -> (i32, i32) {
    %c0_i32 = arith.constant 0 : i32
    %c0_i32_0 = arith.constant 0 : i32
    %c0_i32_1 = arith.constant 0 : i32
    return %c0_i32, %c0_i32_0 : i32, i32
  }
  func.func @transform_3(%arg0: i32) -> (i32, i32) {
    %c0_i32 = arith.constant 0 : i32
    %c0_i32_0 = arith.constant 0 : i32
    %c0_i32_1 = arith.constant 0 : i32
    return %c0_i32, %c0_i32_0 : i32, i32
  }
  func.func @transform_4(%arg0: i32) -> (i32, i32) {
    %c0_i32 = arith.constant 0 : i32
    %c0_i32_0 = arith.constant 0 : i32
    %c0_i32_1 = arith.constant 0 : i32
    return %c0_i32, %c0_i32_0 : i32, i32
  }
  func.func @transform_5(%arg0: i32) -> (i32, i32) {
    %c0_i32 = arith.constant 0 : i32
    %c0_i32_0 = arith.constant 0 : i32
    %c0_i32_1 = arith.constant 0 : i32
    return %c0_i32, %c0_i32_0 : i32, i32
  }
  func.func @transform_6(%arg0: i32) -> (i32, i32) {
    %c0_i32 = arith.constant 0 : i32
    %c0_i32_0 = arith.constant 0 : i32
    %c0_i32_1 = arith.constant 0 : i32
    return %c0_i32, %c0_i32_0 : i32, i32
  }
  func.func @transform_7(%arg0: i32) -> (i32, i32) {
    %c0_i32 = arith.constant 0 : i32
    %c0_i32_0 = arith.constant 0 : i32
    %c0_i32_1 = arith.constant 0 : i32
    return %c0_i32, %c0_i32_0 : i32, i32
  }
  func.func @transform_8(%arg0: i32) -> (i32, i32) {
    %c0_i32 = arith.constant 0 : i32
    %c0_i32_0 = arith.constant 0 : i32
    %c0_i32_1 = arith.constant 0 : i32
    return %c0_i32, %c0_i32_0 : i32, i32
  }
  func.func @transform_9(%arg0: i32) -> (i32, i32) {
    %c0_i32 = arith.constant 0 : i32
    %c0_i32_0 = arith.constant 0 : i32
    %c0_i32_1 = arith.constant 0 : i32
    return %c0_i32, %c0_i32_0 : i32, i32
  }
  func.func @transform_10(%arg0: i32) -> (i32, i32) {
    %c0_i32 = arith.constant 0 : i32
    %c0_i32_0 = arith.constant 0 : i32
    return %arg0, %c0_i32 : i32, i32
  }
}

</mosaic_0001>

<llo_original>
// kernel: tpu_custom_call.1
$region0: #{tpu_custom_call.1}
  #allocation0 [shape = 'u32[]', space=smem, size = 0x4, offset = 0x4, fixed_abs, tag = 'smem constant byte address 0x4 - core index']
  #allocation1 [shape = 'u32[72,128]{1,0:T(1,128)}', space=vmem, size = 0x9000, scoped, tag = 'internal scratch']
  %s0 = inlined_call_operand.hbm [shape: f32[16,32], index: 0, kind: input, shape index: {}]
  %s1 = inlined_call_operand.hbm [shape: bf16[32,512], index: 1, kind: input, shape index: {}]
  %s2 = inlined_call_operand.hbm [shape: f32[1,512], index: 2, kind: input, shape index: {}]
  %s3 = inlined_call_operand.hbm [shape: f32[1,512], index: 3, kind: input, shape index: {}]
  %s4 = inlined_call_operand.hbm [shape: bf16[512,384], index: 4, kind: input, shape index: {}]
  %s5 = inlined_call_operand.vmem [shape: f32[1,384], index: 5, kind: input, shape index: {}]
  %s6 = inlined_call_operand.hbm [shape: f32[1,384], index: 6, kind: input, shape index: {}]
  %s7 = inlined_call_operand.hbm [shape: bf16[384,128], index: 7, kind: input, shape index: {}]
  %s8 = inlined_call_operand.vmem [shape: f32[1,128], index: 8, kind: input, shape index: {}]
  %s9 = inlined_call_operand.vmem [shape: f32[1,128], index: 9, kind: input, shape index: {}]
  %s10 = inlined_call_operand.hbm [shape: bf16[16,128], index: 10, kind: output, shape index: {}]
  %s11 = sld [smem:[#allocation0]]
  $region78: #{tpu_custom_call.1} parent=0
    _
  %s13 = ssub.s32 1, %s11
  %s14 = scalar_select 0, %s13, %s11
  $region1: #{tpu_custom_call.1} parent=0
    #allocation2 [shape = 'u8[8192]{0}', space=vmem, size = 0x2000, scoped, tag = 'input window, operand 0, single buffered']
    #allocation3 [shape = 's32[1]{0}', space=sflag, size = 0x4, scoped, tag = 'scoped memory for tpu_custom_call.1']
    #allocation4 [shape = 's32[1]{0}', space=sflag, size = 0x4, scoped, tag = 'scoped memory for tpu_custom_call.1']
    #allocation5 [shape = 'u8[32768]{0}', space=vmem, size = 0x8000, scoped, tag = 'input window, operand 1, single buffered']
    #allocation6 [shape = 's32[1]{0}', space=sflag, size = 0x4, scoped, tag = 'scoped memory for tpu_custom_call.1']
    #allocation7 [shape = 'u8[2048]{0}', space=vmem, size = 0x800, scoped, tag = 'input window, operand 2, single buffered']
    #allocation8 [shape = 'u8[2048]{0}', space=vmem, size = 0x800, scoped, tag = 'input window, operand 3, single buffered']
    #allocation9 [shape = 's32[1]{0}', space=sflag, size = 0x4, scoped, tag = 'scoped memory for tpu_custom_call.1']
    #allocation10 [shape = 'u8[393216]{0}', space=vmem, size = 0x60000, scoped, tag = 'input window, operand 4, single buffered']
    #allocation11 [shape = 'u8[1536]{0}', space=vmem, size = 0x800, scoped, tag = 'input window, operand 6, single buffered']
    #allocation12 [shape = 's32[1]{0}', space=sflag, size = 0x4, scoped, tag = 'scoped memory for tpu_custom_call.1']
    #allocation13 [shape = 'u8[98304]{0}', space=vmem, size = 0x18000, scoped, tag = 'input window, operand 7, single buffered']
    #allocation14 [shape = 'u8[4096]{0}', space=vmem, size = 0x1000, scoped, tag = 'output window, operand 0, single buffered']
    %15 = vsyncpa [#allocation3], 0
    %16 = vsyncpa [#allocation6], 0
    %17 = vsyncpa [#allocation9], 0
    %18 = vsyncpa [#allocation12], 0
    %19 = vsyncpa [#allocation4], 0
    // Predicated region
    $region2: #{tpu_custom_call.1} parent=1 // pred_check
      _
    $region3: #{tpu_custom_call.1} parent=1 // pred_check_branch
      %21 = sbr.rel (0) target = $region5
    $region4: #{tpu_custom_call.1} parent=1 // pred_region
      %23 = vsyncadd [#allocation3], 0
      %s24 = sshll.u32 %s0, 4
      %s25 = int_to_ptr.hbm [resolvable:$true] %s24
      %s26 = sshll.u32 [#allocation2], 4
      %s27 = int_to_ptr.vmem [resolvable:$true] %s26
      %32 = dma.hbm_to_vmem [thread:$0]  %s25, 256, %s27, [#allocation3], 128, 128, 8
    $region5: #{tpu_custom_call.1} parent=1 // pred_fallthru
      _
    // Predicated region
    $region6: #{tpu_custom_call.1} parent=1 // pred_check
      _
    $region7: #{tpu_custom_call.1} parent=1 // pred_check_branch
      %34 = sbr.rel (0) target = $region9
    $region8: #{tpu_custom_call.1} parent=1 // pred_region
      %36 = vsyncadd [#allocation6], 0
      %s37 = sshll.u32 %s1, 4
      %s38 = int_to_ptr.hbm [resolvable:$true] %s37
      %s39 = sshll.u32 [#allocation5], 4
      %s40 = int_to_ptr.vmem [resolvable:$true] %s39
      %45 = dma.hbm_to_vmem [thread:$0]  %s38, 1024, %s40, [#allocation6], 256, 256, 16
    $region9: #{tpu_custom_call.1} parent=1 // pred_fallthru
      _
    // Predicated region
    $region10: #{tpu_custom_call.1} parent=1 // pred_check
      _
    $region11: #{tpu_custom_call.1} parent=1 // pred_check_branch
      %47 = sbr.rel (0) target = $region13
    $region12: #{tpu_custom_call.1} parent=1 // pred_region
      %49 = vsyncadd [#allocation6], 0
      %s51 = sshll.u32 %s2, 4
      %s52 = int_to_ptr.hbm [resolvable:$true] %s51
      %s53 = sshll.u32 [#allocation7], 4
      %s54 = int_to_ptr.vmem [resolvable:$true] %s53
      %56 = dma.hbm_to_vmem [thread:$0]  %s52, 64, %s54, [#allocation6]
    $region13: #{tpu_custom_call.1} parent=1 // pred_fallthru
      _
    // Predicated region
    $region14: #{tpu_custom_call.1} parent=1 // pred_check
      _
    $region15: #{tpu_custom_call.1} parent=1 // pred_check_branch
      %58 = sbr.rel (0) target = $region17
    $region16: #{tpu_custom_call.1} parent=1 // pred_region
      %60 = vsyncadd [#allocation9], 0
      %s62 = sshll.u32 %s3, 4
      %s63 = int_to_ptr.hbm [resolvable:$true] %s62
      %s64 = sshll.u32 [#allocation8], 4
      %s65 = int_to_ptr.vmem [resolvable:$true] %s64
      %67 = dma.hbm_to_vmem [thread:$0]  %s63, 64, %s65, [#allocation9]
    $region17: #{tpu_custom_call.1} parent=1 // pred_fallthru
      _
    // Predicated region
    $region18: #{tpu_custom_call.1} parent=1 // pred_check
      _
    $region19: #{tpu_custom_call.1} parent=1 // pred_check_branch
      %69 = sbr.rel (0) target = $region21
    $region20: #{tpu_custom_call.1} parent=1 // pred_region
      %71 = vsyncadd [#allocation9], 0
      %s72 = sshll.u32 %s4, 4
      %s73 = int_to_ptr.hbm [resolvable:$true] %s72
      %s74 = sshll.u32 [#allocation10], 4
      %s75 = int_to_ptr.vmem [resolvable:$true] %s74
      %80 = dma.hbm_to_vmem [thread:$0]  %s73, 12288, %s75, [#allocation9], 192, 192, 12
    $region21: #{tpu_custom_call.1} parent=1 // pred_fallthru
      _
    // Predicated region
    $region22: #{tpu_custom_call.1} parent=1 // pred_check
      _
    $region23: #{tpu_custom_call.1} parent=1 // pred_check_branch
      %82 = sbr.rel (0) target = $region25
    $region24: #{tpu_custom_call.1} parent=1 // pred_region
      _
    $region25: #{tpu_custom_call.1} parent=1 // pred_fallthru
      _
    // Predicated region
    $region26: #{tpu_custom_call.1} parent=1 // pred_check
      _
    $region27: #{tpu_custom_call.1} parent=1 // pred_check_branch
      %84 = sbr.rel (0) target = $region29
    $region28: #{tpu_custom_call.1} parent=1 // pred_region
      %86 = vsyncadd [#allocation12], 0
      %s88 = sshll.u32 %s6, 4
      %s89 = int_to_ptr.hbm [resolvable:$true] %s88
      %s90 = sshll.u32 [#allocation11], 4
      %s91 = int_to_ptr.vmem [resolvable:$true] %s90
      %93 = dma.hbm_to_vmem [thread:$0]  %s89, 48, %s91, [#allocation12]
    $region29: #{tpu_custom_call.1} parent=1 // pred_fallthru
      _
    // Predicated region
    $region30: #{tpu_custom_call.1} parent=1 // pred_check
      _
    $region31: #{tpu_custom_call.1} parent=1 // pred_check_branch
      %95 = sbr.rel (0) target = $region33
    $region32: #{tpu_custom_call.1} parent=1 // pred_region
      %97 = vsyncadd [#allocation12], 0
      %s98 = sshll.u32 %s7, 4
      %s99 = int_to_ptr.hbm [resolvable:$true] %s98
      %s100 = sshll.u32 [#allocation13], 4
      %s101 = int_to_ptr.vmem [resolvable:$true] %s100
      %106 = dma.hbm_to_vmem [thread:$0]  %s99, 3072, %s101, [#allocation12], 64, 64, 4
    $region33: #{tpu_custom_call.1} parent=1 // pred_fallthru
      _
    // Predicated region
    $region34: #{tpu_custom_call.1} parent=1 // pred_check
      _
    $region35: #{tpu_custom_call.1} parent=1 // pred_check_branch
      %108 = sbr.rel (0) target = $region37
    $region36: #{tpu_custom_call.1} parent=1 // pred_region
      _
    $region37: #{tpu_custom_call.1} parent=1 // pred_fallthru
      _
    // Predicated region
    $region38: #{tpu_custom_call.1} parent=1 // pred_check
      _
    $region39: #{tpu_custom_call.1} parent=1 // pred_check_branch
      %110 = sbr.rel (0) target = $region41
    $region40: #{tpu_custom_call.1} parent=1 // pred_region
      _
    $region41: #{tpu_custom_call.1} parent=1 // pred_fallthru
      _
    // Predicated region
    $region42: #{tpu_custom_call.1} parent=1 // pred_check
      _
    $region43: #{tpu_custom_call.1} parent=1 // pred_check_branch
      %112 = sbr.rel (0) target = $region45
    $region44: #{tpu_custom_call.1} parent=1 // pred_region
      %114 = dma.done [#allocation3], 256
    $region45: #{tpu_custom_call.1} parent=1 // pred_fallthru
      _
    // Predicated region
    $region46: #{tpu_custom_call.1} parent=1 // pred_check
      _
    $region47: #{tpu_custom_call.1} parent=1 // pred_check_branch
      %116 = sbr.rel (0) target = $region49
    $region48: #{tpu_custom_call.1} parent=1 // pred_region
      %118 = dma.done [#allocation6], 1024
    $region49: #{tpu_custom_call.1} parent=1 // pred_fallthru
      _
    // Predicated region
    $region50: #{tpu_custom_call.1} parent=1 // pred_check
      _
    $region51: #{tpu_custom_call.1} parent=1 // pred_check_branch
      %120 = sbr.rel (0) target = $region53
    $region52: #{tpu_custom_call.1} parent=1 // pred_region
      %122 = dma.done [#allocation6], 64
    $region53: #{tpu_custom_call.1} parent=1 // pred_fallthru
      _
    // Predicated region
    $region54: #{tpu_custom_call.1} parent=1 // pred_check
      _
    $region55: #{tpu_custom_call.1} parent=1 // pred_check_branch
      %124 = sbr.rel (0) target = $region57
    $region56: #{tpu_custom_call.1} parent=1 // pred_region
      %126 = dma.done [#allocation9], 64
    $region57: #{tpu_custom_call.1} parent=1 // pred_fallthru
      _
    // Predicated region
    $region58: #{tpu_custom_call.1} parent=1 // pred_check
      _
    $region59: #{tpu_custom_call.1} parent=1 // pred_check_branch
      %128 = sbr.rel (0) target = $region61
    $region60: #{tpu_custom_call.1} parent=1 // pred_region
      %130 = dma.done [#allocation9], 12288
    $region61: #{tpu_custom_call.1} parent=1 // pred_fallthru
      _
    // Predicated region
    $region62: #{tpu_custom_call.1} parent=1 // pred_check
      _
    $region63: #{tpu_custom_call.1} parent=1 // pred_check_branch
      %132 = sbr.rel (0) target = $region65
    $region64: #{tpu_custom_call.1} parent=1 // pred_region
      %134 = dma.done [#allocation12], 48
    $region65: #{tpu_custom_call.1} parent=1 // pred_fallthru
      _
    // Predicated region
    $region66: #{tpu_custom_call.1} parent=1 // pred_check
      _
    $region67: #{tpu_custom_call.1} parent=1 // pred_check_branch
      %136 = sbr.rel (0) target = $region69
    $region68: #{tpu_custom_call.1} parent=1 // pred_region
      %138 = dma.done [#allocation12], 3072
    $region69: #{tpu_custom_call.1} parent=1 // pred_fallthru
      _
    %v140 = vld [vmem:[#allocation2] sm:$0xff]
    %v141 = vld [vmem:[#allocation2 + $0x8] sm:$0xff]
    %v142 = vpack.c.bf16 %v141, %v140
    %v143 = vld [vmem:[#allocation5] sm:$0xff]
    %v144 = vld [vmem:[#allocation5 + $0x8] sm:$0xff]
    %v145 = vld [vmem:[#allocation5 + $0x10] sm:$0xff]
    %v146 = vld [vmem:[#allocation5 + $0x18] sm:$0xff]
    %v147 = vld [vmem:[#allocation5 + $0x20] sm:$0xff]
    %v148 = vld [vmem:[#allocation5 + $0x28] sm:$0xff]
    %v149 = vld [vmem:[#allocation5 + $0x30] sm:$0xff]
    %v150 = vld [vmem:[#allocation5 + $0x38] sm:$0xff]
    %v159 = vunpack.c.l.b16 %v143
    %v160 = vunpack.c.h.b16 %v143
    %v161 = vunpack.c.l.b16 %v144
    %v162 = vunpack.c.h.b16 %v144
    %v163 = vunpack.c.l.b16 %v145
    %v164 = vunpack.c.h.b16 %v145
    %v165 = vunpack.c.l.b16 %v146
    %v166 = vunpack.c.h.b16 %v146
    %v167 = vunpack.c.l.b16 %v147
    %v168 = vunpack.c.h.b16 %v147
    %v169 = vunpack.c.l.b16 %v148
    %v170 = vunpack.c.h.b16 %v148
    %v171 = vunpack.c.l.b16 %v149
    %v172 = vunpack.c.h.b16 %v149
    %v173 = vunpack.c.l.b16 %v150
    %v174 = vunpack.c.h.b16 %v150
    %v175 = vpack.c.b16 %v163, %v159
    %v176 = vpack.c.b16 %v164, %v160
    %v177 = vpack.c.b16 %v165, %v161
    %v178 = vpack.c.b16 %v166, %v162
    %v179 = vpack.c.b16 %v171, %v167
    %v180 = vpack.c.b16 %v172, %v168
    %v181 = vpack.c.b16 %v173, %v169
    %v182 = vpack.c.b16 %v174, %v170
    %vm191 = vcmask 261120
    %v193 = vsel %vm191, %v142, 0
    %195 = vmatpush.bf16.msra.mxu0 0
    %196 = vmatpush.bf16.msra.mxu0 0
    %197 = vmatpush.bf16.msra.mxu0 0
    %198 = vmatpush.bf16.msra.mxu0 0
    %199 = vmatpush.bf16.msra.mxu0 0
    %200 = vmatpush.bf16.msra.mxu0 0
    %201 = vmatpush.bf16.msra.mxu0 %v179
    %202 = vmatpush.bf16.msra.mxu0 %v175
    %203 = vmatmul.bf16.gmra.mxu0 %v193
    %v204 = vpop.f32.mrf.mxu0
    %v205 = vadd.f32 0.0, %v204
    %v206 = vpop.f32.mrf.mxu0
    %v207 = vadd.f32 0.0, %v206
    %208 = vdwg.mxu0
    %209 = vmatpush.bf16.msra.mxu0 0
    %210 = vmatpush.bf16.msra.mxu0 0
    %211 = vmatpush.bf16.msra.mxu0 0
    %212 = vmatpush.bf16.msra.mxu0 0
    %213 = vmatpush.bf16.msra.mxu0 0
    %214 = vmatpush.bf16.msra.mxu0 0
    %215 = vmatpush.bf16.msra.mxu0 %v180
    %216 = vmatpush.bf16.msra.mxu0 %v176
    %217 = vmatmul.bf16.gmra.mxu0 %v193
    %v218 = vpop.f32.mrf.mxu0
    %v219 = vadd.f32 0.0, %v218
    %v220 = vpop.f32.mrf.mxu0
    %v221 = vadd.f32 0.0, %v220
    %222 = vdwg.mxu0
    %223 = vmatpush.bf16.msra.mxu0 0
    %224 = vmatpush.bf16.msra.mxu0 0
    %225 = vmatpush.bf16.msra.mxu0 0
    %226 = vmatpush.bf16.msra.mxu0 0
    %227 = vmatpush.bf16.msra.mxu0 0
    %228 = vmatpush.bf16.msra.mxu0 0
    %229 = vmatpush.bf16.msra.mxu0 %v181
    %230 = vmatpush.bf16.msra.mxu0 %v177
    %231 = vmatmul.bf16.gmra.mxu0 %v193
    %v232 = vpop.f32.mrf.mxu0
    %v233 = vadd.f32 0.0, %v232
    %v234 = vpop.f32.mrf.mxu0
    %v235 = vadd.f32 0.0, %v234
    %236 = vdwg.mxu0
    %237 = vmatpush.bf16.msra.mxu0 0
    %238 = vmatpush.bf16.msra.mxu0 0
    %239 = vmatpush.bf16.msra.mxu0 0
    %240 = vmatpush.bf16.msra.mxu0 0
    %241 = vmatpush.bf16.msra.mxu0 0
    %242 = vmatpush.bf16.msra.mxu0 0
    %243 = vmatpush.bf16.msra.mxu0 %v182
    %244 = vmatpush.bf16.msra.mxu0 %v178
    %245 = vmatmul.bf16.gmra.mxu0 %v193
    %v246 = vpop.f32.mrf.mxu0
    %v247 = vadd.f32 0.0, %v246
    %v248 = vpop.f32.mrf.mxu0
    %v249 = vadd.f32 0.0, %v248
    %250 = vdwg.mxu0
    %v251 = vld [vmem:[#allocation7] sm:$0xf]
    %v253 = vperm.slane %v251, 0
    %v254 = vperm.slane %v251, 1
    %v255 = vperm.slane %v251, 2
    %v256 = vperm.slane %v251, 3
    %v261 = vmul.f32 %v205, %v253
    %v262 = vmul.f32 %v219, %v254
    %v263 = vmul.f32 %v233, %v255
    %v264 = vmul.f32 %v247, %v256
    %v265 = vmul.f32 %v207, %v253
    %v266 = vmul.f32 %v221, %v254
    %v267 = vmul.f32 %v235, %v255
    %v268 = vmul.f32 %v249, %v256
    %v269 = vld [vmem:[#allocation8] sm:$0xf]
    %v271 = vperm.slane %v269, 0
    %v272 = vperm.slane %v269, 1
    %v273 = vperm.slane %v269, 2
    %v274 = vperm.slane %v269, 3
    %v279 = vadd.f32 %v261, %v271
    %v280 = vadd.f32 %v262, %v272
    %v281 = vadd.f32 %v263, %v273
    %v282 = vadd.f32 %v264, %v274
    %v283 = vadd.f32 %v265, %v271
    %v284 = vadd.f32 %v266, %v272
    %v285 = vadd.f32 %v267, %v273
    %v286 = vadd.f32 %v268, %v274
    %vm287 = vcmp.gt.f32.partialorder %v279, 0.0
    %vm288 = vcmp.gt.f32.partialorder %v280, 0.0
    %vm289 = vcmp.gt.f32.partialorder %v281, 0.0
    %vm290 = vcmp.gt.f32.partialorder %v282, 0.0
    %vm291 = vcmp.gt.f32.partialorder %v283, 0.0
    %vm292 = vcmp.gt.f32.partialorder %v284, 0.0
    %vm293 = vcmp.gt.f32.partialorder %v285, 0.0
    %vm294 = vcmp.gt.f32.partialorder %v286, 0.0
    %v295 = vmin.f32 %v279, 0.0
    %v296 = vmin.f32 %v280, 0.0
    %v297 = vmin.f32 %v281, 0.0
    %v298 = vmin.f32 %v282, 0.0
    %v299 = vmin.f32 %v283, 0.0
    %v300 = vmin.f32 %v284, 0.0
    %v301 = vmin.f32 %v285, 0.0
    %v302 = vmin.f32 %v286, 0.0
    %v303 = vmul.f32 %v295, 1.442695
    %v304 = vpow.pop %v303
    %v305 = vmul.f32 %v296, 1.442695
    %v306 = vpow.pop %v305
    %v307 = vmul.f32 %v297, 1.442695
    %v308 = vpow.pop %v307
    %v309 = vmul.f32 %v298, 1.442695
    %v310 = vpow.pop %v309
    %v311 = vmul.f32 %v299, 1.442695
    %v312 = vpow.pop %v311
    %v313 = vmul.f32 %v300, 1.442695
    %v314 = vpow.pop %v313
    %v315 = vmul.f32 %v301, 1.442695
    %v316 = vpow.pop %v315
    %v317 = vmul.f32 %v302, 1.442695
    %v318 = vpow.pop %v317
    %v319 = vsub.f32 %v304, 1.0
    %v320 = vsub.f32 %v306, 1.0
    %v321 = vsub.f32 %v308, 1.0
    %v322 = vsub.f32 %v310, 1.0
    %v323 = vsub.f32 %v312, 1.0
    %v324 = vsub.f32 %v314, 1.0
    %v325 = vsub.f32 %v316, 1.0
    %v326 = vsub.f32 %v318, 1.0
    %v327 = vsel %vm287, %v279, %v319
    %v328 = vsel %vm288, %v280, %v320
    %v329 = vsel %vm289, %v281, %v321
    %v330 = vsel %vm290, %v282, %v322
    %v331 = vsel %vm291, %v283, %v323
    %v332 = vsel %vm292, %v284, %v324
    %v333 = vsel %vm293, %v285, %v325
    %v334 = vsel %vm294, %v286, %v326
    %v335 = vpack.c.bf16 %v331, %v327
    %v336 = vpack.c.bf16 %v332, %v328
    %v337 = vpack.c.bf16 %v333, %v329
    %v338 = vpack.c.bf16 %v334, %v330
    %v339 = vld [vmem:[#allocation10] sm:$0xff]
    %v340 = vld [vmem:[#allocation10 + $0x8] sm:$0xf]
    %v341 = vld [vmem:[#allocation10 + $0xc] sm:$0xff]
    %v342 = vld [vmem:[#allocation10 + $0x14] sm:$0xf]
    %v343 = vld [vmem:[#allocation10 + $0x18] sm:$0xff]
    %v344 = vld [vmem:[#allocation10 + $0x20] sm:$0xf]
    %v345 = vld [vmem:[#allocation10 + $0x24] sm:$0xff]
    %v346 = vld [vmem:[#allocation10 + $0x2c] sm:$0xf]
    %v347 = vld [vmem:[#allocation10 + $0x30] sm:$0xff]
    %v348 = vld [vmem:[#allocation10 + $0x38] sm:$0xf]
    %v349 = vld [vmem:[#allocation10 + $0x3c] sm:$0xff]
    %v350 = vld [vmem:[#allocation10 + $0x44] sm:$0xf]
    %v351 = vld [vmem:[#allocation10 + $0x48] sm:$0xff]
    %v352 = vld [vmem:[#allocation10 + $0x50] sm:$0xf]
    %v353 = vld [vmem:[#allocation10 + $0x54] sm:$0xff]
    %v354 = vld [vmem:[#allocation10 + $0x5c] sm:$0xf]
    %v355 = vld [vmem:[#allocation10 + $0x60] sm:$0xff]
    %v356 = vld [vmem:[#allocation10 + $0x68] sm:$0xf]
    %v357 = vld [vmem:[#allocation10 + $0x6c] sm:$0xff]
    %v358 = vld [vmem:[#allocation10 + $0x74] sm:$0xf]
    %v359 = vld [vmem:[#allocation10 + $0x78] sm:$0xff]
    %v360 = vld [vmem:[#allocation10 + $0x80] sm:$0xf]
    %v361 = vld [vmem:[#allocation10 + $0x84] sm:$0xff]
    %v362 = vld [vmem:[#allocation10 + $0x8c] sm:$0xf]
    %v363 = vld [vmem:[#allocation10 + $0x90] sm:$0xff]
    %v364 = vld [vmem:[#allocation10 + $0x98] sm:$0xf]
    %v365 = vld [vmem:[#allocation10 + $0x9c] sm:$0xff]
    %v366 = vld [vmem:[#allocation10 + $0xa4] sm:$0xf]
    %v367 = vld [vmem:[#allocation10 + $0xa8] sm:$0xff]
    %v368 = vld [vmem:[#allocation10 + $0xb0] sm:$0xf]
    %v369 = vld [vmem:[#allocation10 + $0xb4] sm:$0xff]
    %v370 = vld [vmem:[#allocation10 + $0xbc] sm:$0xf]
    %v371 = vld [vmem:[#allocation10 + $0xc0] sm:$0xff]
    %v372 = vld [vmem:[#allocation10 + $0xc8] sm:$0xf]
    %v373 = vld [vmem:[#allocation10 + $0xcc] sm:$0xff]
    %v374 = vld [vmem:[#allocation10 + $0xd4] sm:$0xf]
    %v375 = vld [vmem:[#allocation10 + $0xd8] sm:$0xff]
    %v376 = vld [vmem:[#allocation10 + $0xe0] sm:$0xf]
    %v377 = vld [vmem:[#allocation10 + $0xe4] sm:$0xff]
    %v378 = vld [vmem:[#allocation10 + $0xec] sm:$0xf]
    %v379 = vld [vmem:[#allocation10 + $0xf0] sm:$0xff]
    %v380 = vld [vmem:[#allocation10 + $0xf8] sm:$0xf]
    %v381 = vld [vmem:[#allocation10 + $0xfc] sm:$0xff]
    %v382 = vld [vmem:[#allocation10 + $0x104] sm:$0xf]
    %v383 = vld [vmem:[#allocation10 + $0x108] sm:$0xff]
    %v384 = vld [vmem:[#allocation10 + $0x110] sm:$0xf]
    %v385 = vld [vmem:[#allocation10 + $0x114] sm:$0xff]
    %v386 = vld [vmem:[#allocation10 + $0x11c] sm:$0xf]
    %v387 = vld [vmem:[#allocation10 + $0x120] sm:$0xff]
    %v388 = vld [vmem:[#allocation10 + $0x128] sm:$0xf]
    %v389 = vld [vmem:[#allocation10 + $0x12c] sm:$0xff]
    %v390 = vld [vmem:[#allocation10 + $0x134] sm:$0xf]
    %v391 = vld [vmem:[#allocation10 + $0x138] sm:$0xff]
    %v392 = vld [vmem:[#allocation10 + $0x140] sm:$0xf]
    %v393 = vld [vmem:[#allocation10 + $0x144] sm:$0xff]
    %v394 = vld [vmem:[#allocation10 + $0x14c] sm:$0xf]
    %v395 = vld [vmem:[#allocation10 + $0x150] sm:$0xff]
    %v396 = vld [vmem:[#allocation10 + $0x158] sm:$0xf]
    %v397 = vld [vmem:[#allocation10 + $0x15c] sm:$0xff]
    %v398 = vld [vmem:[#allocation10 + $0x164] sm:$0xf]
    %v399 = vld [vmem:[#allocation10 + $0x168] sm:$0xff]
    %v400 = vld [vmem:[#allocation10 + $0x170] sm:$0xf]
    %v401 = vld [vmem:[#allocation10 + $0x174] sm:$0xff]
    %v402 = vld [vmem:[#allocation10 + $0x17c] sm:$0xf]
    %v403 = vld [vmem:[#allocation10 + $0x180] sm:$0xff]
    %v404 = vld [vmem:[#allocation10 + $0x188] sm:$0xf]
    %v405 = vld [vmem:[#allocation10 + $0x18c] sm:$0xff]
    %v406 = vld [vmem:[#allocation10 + $0x194] sm:$0xf]
    %v407 = vld [vmem:[#allocation10 + $0x198] sm:$0xff]
    %v408 = vld [vmem:[#allocation10 + $0x1a0] sm:$0xf]
    %v409 = vld [vmem:[#allocation10 + $0x1a4] sm:$0xff]
    %v410 = vld [vmem:[#allocation10 + $0x1ac] sm:$0xf]
    %v411 = vld [vmem:[#allocation10 + $0x1b0] sm:$0xff]
    %v412 = vld [vmem:[#allocation10 + $0x1b8] sm:$0xf]
    %v413 = vld [vmem:[#allocation10 + $0x1bc] sm:$0xff]
    %v414 = vld [vmem:[#allocation10 + $0x1c4] sm:$0xf]
    %v415 = vld [vmem:[#allocation10 + $0x1c8] sm:$0xff]
    %v416 = vld [vmem:[#allocation10 + $0x1d0] sm:$0xf]
    %v417 = vld [vmem:[#allocation10 + $0x1d4] sm:$0xff]
    %v418 = vld [vmem:[#allocation10 + $0x1dc] sm:$0xf]
    %v419 = vld [vmem:[#allocation10 + $0x1e0] sm:$0xff]
    %v420 = vld [vmem:[#allocation10 + $0x1e8] sm:$0xf]
    %v421 = vld [vmem:[#allocation10 + $0x1ec] sm:$0xff]
    %v422 = vld [vmem:[#allocation10 + $0x1f4] sm:$0xf]
    %v423 = vld [vmem:[#allocation10 + $0x1f8] sm:$0xff]
    %v424 = vld [vmem:[#allocation10 + $0x200] sm:$0xf]
    %v425 = vld [vmem:[#allocation10 + $0x204] sm:$0xff]
    %v426 = vld [vmem:[#allocation10 + $0x20c] sm:$0xf]
    %v427 = vld [vmem:[#allocation10 + $0x210] sm:$0xff]
    %v428 = vld [vmem:[#allocation10 + $0x218] sm:$0xf]
    %v429 = vld [vmem:[#allocation10 + $0x21c] sm:$0xff]
    %v430 = vld [vmem:[#allocation10 + $0x224] sm:$0xf]
    %v431 = vld [vmem:[#allocation10 + $0x228] sm:$0xff]
    %v432 = vld [vmem:[#allocation10 + $0x230] sm:$0xf]
    %v433 = vld [vmem:[#allocation10 + $0x234] sm:$0xff]
    %v434 = vld [vmem:[#allocation10 + $0x23c] sm:$0xf]
    %v435 = vld [vmem:[#allocation10 + $0x240] sm:$0xff]
    %v436 = vld [vmem:[#allocation10 + $0x248] sm:$0xf]
    %v437 = vld [vmem:[#allocation10 + $0x24c] sm:$0xff]
    %v438 = vld [vmem:[#allocation10 + $0x254] sm:$0xf]
    %v439 = vld [vmem:[#allocation10 + $0x258] sm:$0xff]
    %v440 = vld [vmem:[#allocation10 + $0x260] sm:$0xf]
    %v441 = vld [vmem:[#allocation10 + $0x264] sm:$0xff]
    %v442 = vld [vmem:[#allocation10 + $0x26c] sm:$0xf]
    %v443 = vld [vmem:[#allocation10 + $0x270] sm:$0xff]
    %v444 = vld [vmem:[#allocation10 + $0x278] sm:$0xf]
    %v445 = vld [vmem:[#allocation10 + $0x27c] sm:$0xff]
    %v446 = vld [vmem:[#allocation10 + $0x284] sm:$0xf]
    %v447 = vld [vmem:[#allocation10 + $0x288] sm:$0xff]
    %v448 = vld [vmem:[#allocation10 + $0x290] sm:$0xf]
    %v449 = vld [vmem:[#allocation10 + $0x294] sm:$0xff]
    %v450 = vld [vmem:[#allocation10 + $0x29c] sm:$0xf]
    %v451 = vld [vmem:[#allocation10 + $0x2a0] sm:$0xff]
    %v452 = vld [vmem:[#allocation10 + $0x2a8] sm:$0xf]
    %v453 = vld [vmem:[#allocation10 + $0x2ac] sm:$0xff]
    %v454 = vld [vmem:[#allocation10 + $0x2b4] sm:$0xf]
    %v455 = vld [vmem:[#allocation10 + $0x2b8] sm:$0xff]
    %v456 = vld [vmem:[#allocation10 + $0x2c0] sm:$0xf]
    %v457 = vld [vmem:[#allocation10 + $0x2c4] sm:$0xff]
    %v458 = vld [vmem:[#allocation10 + $0x2cc] sm:$0xf]
    %v459 = vld [vmem:[#allocation10 + $0x2d0] sm:$0xff]
    %v460 = vld [vmem:[#allocation10 + $0x2d8] sm:$0xf]
    %v461 = vld [vmem:[#allocation10 + $0x2dc] sm:$0xff]
    %v462 = vld [vmem:[#allocation10 + $0x2e4] sm:$0xf]
    %v463 = vld [vmem:[#allocation10 + $0x2e8] sm:$0xff]
    %v464 = vld [vmem:[#allocation10 + $0x2f0] sm:$0xf]
    %v465 = vld [vmem:[#allocation10 + $0x2f4] sm:$0xff]
    %v466 = vld [vmem:[#allocation10 + $0x2fc] sm:$0xf]
    %v595 = vunpack.c.l.b16 %v339
    %v596 = vunpack.c.h.b16 %v339
    %v597 = vunpack.c.l.b16 %v340
    %v598 = vunpack.c.l.b16 %v341
    %v599 = vunpack.c.h.b16 %v341
    %v600 = vunpack.c.l.b16 %v342
    %v601 = vunpack.c.l.b16 %v343
    %v602 = vunpack.c.h.b16 %v343
    %v603 = vunpack.c.l.b16 %v344
    %v604 = vunpack.c.l.b16 %v345
    %v605 = vunpack.c.h.b16 %v345
    %v606 = vunpack.c.l.b16 %v346
    %v607 = vunpack.c.l.b16 %v347
    %v608 = vunpack.c.h.b16 %v347
    %v609 = vunpack.c.l.b16 %v348
    %v610 = vunpack.c.l.b16 %v349
    %v611 = vunpack.c.h.b16 %v349
    %v612 = vunpack.c.l.b16 %v350
    %v613 = vunpack.c.l.b16 %v351
    %v614 = vunpack.c.h.b16 %v351
    %v615 = vunpack.c.l.b16 %v352
    %v616 = vunpack.c.l.b16 %v353
    %v617 = vunpack.c.h.b16 %v353
    %v618 = vunpack.c.l.b16 %v354
    %v619 = vunpack.c.l.b16 %v355
    %v620 = vunpack.c.h.b16 %v355
    %v621 = vunpack.c.l.b16 %v356
    %v622 = vunpack.c.l.b16 %v357
    %v623 = vunpack.c.h.b16 %v357
    %v624 = vunpack.c.l.b16 %v358
    %v625 = vunpack.c.l.b16 %v359
    %v626 = vunpack.c.h.b16 %v359
    %v627 = vunpack.c.l.b16 %v360
    %v628 = vunpack.c.l.b16 %v361
    %v629 = vunpack.c.h.b16 %v361
    %v630 = vunpack.c.l.b16 %v362
    %v631 = vunpack.c.l.b16 %v363
    %v632 = vunpack.c.h.b16 %v363
    %v633 = vunpack.c.l.b16 %v364
    %v634 = vunpack.c.l.b16 %v365
    %v635 = vunpack.c.h.b16 %v365
    %v636 = vunpack.c.l.b16 %v366
    %v637 = vunpack.c.l.b16 %v367
    %v638 = vunpack.c.h.b16 %v367
    %v639 = vunpack.c.l.b16 %v368
    %v640 = vunpack.c.l.b16 %v369
    %v641 = vunpack.c.h.b16 %v369
    %v642 = vunpack.c.l.b16 %v370
    %v643 = vunpack.c.l.b16 %v371
    %v644 = vunpack.c.h.b16 %v371
    %v645 = vunpack.c.l.b16 %v372
    %v646 = vunpack.c.l.b16 %v373
    %v647 = vunpack.c.h.b16 %v373
    %v648 = vunpack.c.l.b16 %v374
    %v649 = vunpack.c.l.b16 %v375
    %v650 = vunpack.c.h.b16 %v375
    %v651 = vunpack.c.l.b16 %v376
    %v652 = vunpack.c.l.b16 %v377
    %v653 = vunpack.c.h.b16 %v377
    %v654 = vunpack.c.l.b16 %v378
    %v655 = vunpack.c.l.b16 %v379
    %v656 = vunpack.c.h.b16 %v379
    %v657 = vunpack.c.l.b16 %v380
    %v658 = vunpack.c.l.b16 %v381
    %v659 = vunpack.c.h.b16 %v381
    %v660 = vunpack.c.l.b16 %v382
    %v661 = vunpack.c.l.b16 %v383
    %v662 = vunpack.c.h.b16 %v383
    %v663 = vunpack.c.l.b16 %v384
    %v664 = vunpack.c.l.b16 %v385
    %v665 = vunpack.c.h.b16 %v385
    %v666 = vunpack.c.l.b16 %v386
    %v667 = vunpack.c.l.b16 %v387
    %v668 = vunpack.c.h.b16 %v387
    %v669 = vunpack.c.l.b16 %v388
    %v670 = vunpack.c.l.b16 %v389
    %v671 = vunpack.c.h.b16 %v389
    %v672 = vunpack.c.l.b16 %v390
    %v673 = vunpack.c.l.b16 %v391
    %v674 = vunpack.c.h.b16 %v391
    %v675 = vunpack.c.l.b16 %v392
    %v676 = vunpack.c.l.b16 %v393
    %v677 = vunpack.c.h.b16 %v393
    %v678 = vunpack.c.l.b16 %v394
    %v679 = vunpack.c.l.b16 %v395
    %v680 = vunpack.c.h.b16 %v395
    %v681 = vunpack.c.l.b16 %v396
    %v682 = vunpack.c.l.b16 %v397
    %v683 = vunpack.c.h.b16 %v397
    %v684 = vunpack.c.l.b16 %v398
    %v685 = vunpack.c.l.b16 %v399
    %v686 = vunpack.c.h.b16 %v399
    %v687 = vunpack.c.l.b16 %v400
    %v688 = vunpack.c.l.b16 %v401
    %v689 = vunpack.c.h.b16 %v401
    %v690 = vunpack.c.l.b16 %v402
    %v691 = vunpack.c.l.b16 %v403
    %v692 = vunpack.c.h.b16 %v403
    %v693 = vunpack.c.l.b16 %v404
    %v694 = vunpack.c.l.b16 %v405
    %v695 = vunpack.c.h.b16 %v405
    %v696 = vunpack.c.l.b16 %v406
    %v697 = vunpack.c.l.b16 %v407
    %v698 = vunpack.c.h.b16 %v407
    %v699 = vunpack.c.l.b16 %v408
    %v700 = vunpack.c.l.b16 %v409
    %v701 = vunpack.c.h.b16 %v409
    %v702 = vunpack.c.l.b16 %v410
    %v703 = vunpack.c.l.b16 %v411
    %v704 = vunpack.c.h.b16 %v411
    %v705 = vunpack.c.l.b16 %v412
    %v706 = vunpack.c.l.b16 %v413
    %v707 = vunpack.c.h.b16 %v413
    %v708 = vunpack.c.l.b16 %v414
    %v709 = vunpack.c.l.b16 %v415
    %v710 = vunpack.c.h.b16 %v415
    %v711 = vunpack.c.l.b16 %v416
    %v712 = vunpack.c.l.b16 %v417
    %v713 = vunpack.c.h.b16 %v417
    %v714 = vunpack.c.l.b16 %v418
    %v715 = vunpack.c.l.b16 %v419
    %v716 = vunpack.c.h.b16 %v419
    %v717 = vunpack.c.l.b16 %v420
    %v718 = vunpack.c.l.b16 %v421
    %v719 = vunpack.c.h.b16 %v421
    %v720 = vunpack.c.l.b16 %v422
    %v721 = vunpack.c.l.b16 %v423
    %v722 = vunpack.c.h.b16 %v423
    %v723 = vunpack.c.l.b16 %v424
    %v724 = vunpack.c.l.b16 %v425
    %v725 = vunpack.c.h.b16 %v425
    %v726 = vunpack.c.l.b16 %v426
    %v727 = vunpack.c.l.b16 %v427
    %v728 = vunpack.c.h.b16 %v427
    %v729 = vunpack.c.l.b16 %v428
    %v730 = vunpack.c.l.b16 %v429
    %v731 = vunpack.c.h.b16 %v429
    %v732 = vunpack.c.l.b16 %v430
    %v733 = vunpack.c.l.b16 %v431
    %v734 = vunpack.c.h.b16 %v431
    %v735 = vunpack.c.l.b16 %v432
    %v736 = vunpack.c.l.b16 %v433
    %v737 = vunpack.c.h.b16 %v433
    %v738 = vunpack.c.l.b16 %v434
    %v739 = vunpack.c.l.b16 %v435
    %v740 = vunpack.c.h.b16 %v435
    %v741 = vunpack.c.l.b16 %v436
    %v742 = vunpack.c.l.b16 %v437
    %v743 = vunpack.c.h.b16 %v437
    %v744 = vunpack.c.l.b16 %v438
    %v745 = vunpack.c.l.b16 %v439
    %v746 = vunpack.c.h.b16 %v439
    %v747 = vunpack.c.l.b16 %v440
    %v748 = vunpack.c.l.b16 %v441
    %v749 = vunpack.c.h.b16 %v441
    %v750 = vunpack.c.l.b16 %v442
    %v751 = vunpack.c.l.b16 %v443
    %v752 = vunpack.c.h.b16 %v443
    %v753 = vunpack.c.l.b16 %v444
    %v754 = vunpack.c.l.b16 %v445
    %v755 = vunpack.c.h.b16 %v445
    %v756 = vunpack.c.l.b16 %v446
    %v757 = vunpack.c.l.b16 %v447
    %v758 = vunpack.c.h.b16 %v447
    %v759 = vunpack.c.l.b16 %v448
    %v760 = vunpack.c.l.b16 %v449
    %v761 = vunpack.c.h.b16 %v449
    %v762 = vunpack.c.l.b16 %v450
    %v763 = vunpack.c.l.b16 %v451
    %v764 = vunpack.c.h.b16 %v451
    %v765 = vunpack.c.l.b16 %v452
    %v766 = vunpack.c.l.b16 %v453
    %v767 = vunpack.c.h.b16 %v453
    %v768 = vunpack.c.l.b16 %v454
    %v769 = vunpack.c.l.b16 %v455
    %v770 = vunpack.c.h.b16 %v455
    %v771 = vunpack.c.l.b16 %v456
    %v772 = vunpack.c.l.b16 %v457
    %v773 = vunpack.c.h.b16 %v457
    %v774 = vunpack.c.l.b16 %v458
    %v775 = vunpack.c.l.b16 %v459
    %v776 = vunpack.c.h.b16 %v459
    %v777 = vunpack.c.l.b16 %v460
    %v778 = vunpack.c.l.b16 %v461
    %v779 = vunpack.c.h.b16 %v461
    %v780 = vunpack.c.l.b16 %v462
    %v781 = vunpack.c.l.b16 %v463
    %v782 = vunpack.c.h.b16 %v463
    %v783 = vunpack.c.l.b16 %v464
    %v784 = vunpack.c.l.b16 %v465
    %v785 = vunpack.c.h.b16 %v465
    %v786 = vunpack.c.l.b16 %v466
    %v787 = vpack.c.b16 %v598, %v595
    %v788 = vpack.c.b16 %v599, %v596
    %v789 = vpack.c.b16 %v600, %v597
    %v790 = vpack.c.b16 %v604, %v601
    %v791 = vpack.c.b16 %v605, %v602
    %v792 = vpack.c.b16 %v606, %v603
    %v793 = vpack.c.b16 %v610, %v607
    %v794 = vpack.c.b16 %v611, %v608
    %v795 = vpack.c.b16 %v612, %v609
    %v796 = vpack.c.b16 %v616, %v613
    %v797 = vpack.c.b16 %v617, %v614
    %v798 = vpack.c.b16 %v618, %v615
    %v799 = vpack.c.b16 %v622, %v619
    %v800 = vpack.c.b16 %v623, %v620
    %v801 = vpack.c.b16 %v624, %v621
    %v802 = vpack.c.b16 %v628, %v625
    %v803 = vpack.c.b16 %v629, %v626
    %v804 = vpack.c.b16 %v630, %v627
    %v805 = vpack.c.b16 %v634, %v631
    %v806 = vpack.c.b16 %v635, %v632
    %v807 = vpack.c.b16 %v636, %v633
    %v808 = vpack.c.b16 %v640, %v637
    %v809 = vpack.c.b16 %v641, %v638
    %v810 = vpack.c.b16 %v642, %v639
    %v811 = vpack.c.b16 %v646, %v643
    %v812 = vpack.c.b16 %v647, %v644
    %v813 = vpack.c.b16 %v648, %v645
    %v814 = vpack.c.b16 %v652, %v649
    %v815 = vpack.c.b16 %v653, %v650
    %v816 = vpack.c.b16 %v654, %v651
    %v817 = vpack.c.b16 %v658, %v655
    %v818 = vpack.c.b16 %v659, %v656
    %v819 = vpack.c.b16 %v660, %v657
    %v820 = vpack.c.b16 %v664, %v661
    %v821 = vpack.c.b16 %v665, %v662
    %v822 = vpack.c.b16 %v666, %v663
    %v823 = vpack.c.b16 %v670, %v667
    %v824 = vpack.c.b16 %v671, %v668
    %v825 = vpack.c.b16 %v672, %v669
    %v826 = vpack.c.b16 %v676, %v673
    %v827 = vpack.c.b16 %v677, %v674
    %v828 = vpack.c.b16 %v678, %v675
    %v829 = vpack.c.b16 %v682, %v679
    %v830 = vpack.c.b16 %v683, %v680
    %v831 = vpack.c.b16 %v684, %v681
    %v832 = vpack.c.b16 %v688, %v685
    %v833 = vpack.c.b16 %v689, %v686
    %v834 = vpack.c.b16 %v690, %v687
    %v835 = vpack.c.b16 %v694, %v691
    %v836 = vpack.c.b16 %v695, %v692
    %v837 = vpack.c.b16 %v696, %v693
    %v838 = vpack.c.b16 %v700, %v697
    %v839 = vpack.c.b16 %v701, %v698
    %v840 = vpack.c.b16 %v702, %v699
    %v841 = vpack.c.b16 %v706, %v703
    %v842 = vpack.c.b16 %v707, %v704
    %v843 = vpack.c.b16 %v708, %v705
    %v844 = vpack.c.b16 %v712, %v709
    %v845 = vpack.c.b16 %v713, %v710
    %v846 = vpack.c.b16 %v714, %v711
    %v847 = vpack.c.b16 %v718, %v715
    %v848 = vpack.c.b16 %v719, %v716
    %v849 = vpack.c.b16 %v720, %v717
    %v850 = vpack.c.b16 %v724, %v721
    %v851 = vpack.c.b16 %v725, %v722
    %v852 = vpack.c.b16 %v726, %v723
    %v853 = vpack.c.b16 %v730, %v727
    %v854 = vpack.c.b16 %v731, %v728
    %v855 = vpack.c.b16 %v732, %v729
    %v856 = vpack.c.b16 %v736, %v733
    %v857 = vpack.c.b16 %v737, %v734
    %v858 = vpack.c.b16 %v738, %v735
    %v859 = vpack.c.b16 %v742, %v739
    %v860 = vpack.c.b16 %v743, %v740
    %v861 = vpack.c.b16 %v744, %v741
    %v862 = vpack.c.b16 %v748, %v745
    %v863 = vpack.c.b16 %v749, %v746
    %v864 = vpack.c.b16 %v750, %v747
    %v865 = vpack.c.b16 %v754, %v751
    %v866 = vpack.c.b16 %v755, %v752
    %v867 = vpack.c.b16 %v756, %v753
    %v868 = vpack.c.b16 %v760, %v757
    %v869 = vpack.c.b16 %v761, %v758
    %v870 = vpack.c.b16 %v762, %v759
    %v871 = vpack.c.b16 %v766, %v763
    %v872 = vpack.c.b16 %v767, %v764
    %v873 = vpack.c.b16 %v768, %v765
    %v874 = vpack.c.b16 %v772, %v769
    %v875 = vpack.c.b16 %v773, %v770
    %v876 = vpack.c.b16 %v774, %v771
    %v877 = vpack.c.b16 %v778, %v775
    %v878 = vpack.c.b16 %v779, %v776
    %v879 = vpack.c.b16 %v780, %v777
    %v880 = vpack.c.b16 %v784, %v781
    %v881 = vpack.c.b16 %v785, %v782
    %v882 = vpack.c.b16 %v786, %v783
    %979 = vmatpush.bf16.msra.mxu0 %v808
    %980 = vmatpush.bf16.msra.mxu0 %v805
    %981 = vmatpush.bf16.msra.mxu0 %v802
    %982 = vmatpush.bf16.msra.mxu0 %v799
    %983 = vmatpush.bf16.msra.mxu0 %v796
    %984 = vmatpush.bf16.msra.mxu0 %v793
    %985 = vmatpush.bf16.msra.mxu0 %v790
    %986 = vmatpush.bf16.msra.mxu0 %v787
    %987 = vmatmul.bf16.gmra.mxu0 %v335
    %v988 = vpop.f32.mrf.mxu0
    %v989 = vadd.f32 0.0, %v988
    %v990 = vpop.f32.mrf.mxu0
    %v991 = vadd.f32 0.0, %v990
    %992 = vdwg.mxu0
    %993 = vmatpush.bf16.msra.mxu0 %v832
    %994 = vmatpush.bf16.msra.mxu0 %v829
    %995 = vmatpush.bf16.msra.mxu0 %v826
    %996 = vmatpush.bf16.msra.mxu0 %v823
    %997 = vmatpush.bf16.msra.mxu0 %v820
    %998 = vmatpush.bf16.msra.mxu0 %v817
    %999 = vmatpush.bf16.msra.mxu0 %v814
    %1000 = vmatpush.bf16.msra.mxu0 %v811
    %1001 = vmatmul.bf16.gmra.mxu0 %v336
    %v1002 = vpop.f32.mrf.mxu0
    %v1003 = vadd.f32 %v989, %v1002
    %v1004 = vpop.f32.mrf.mxu0
    %v1005 = vadd.f32 %v991, %v1004
    %1006 = vdwg.mxu0
    %1007 = vmatpush.bf16.msra.mxu0 %v856
    %1008 = vmatpush.bf16.msra.mxu0 %v853
    %1009 = vmatpush.bf16.msra.mxu0 %v850
    %1010 = vmatpush.bf16.msra.mxu0 %v847
    %1011 = vmatpush.bf16.msra.mxu0 %v844
    %1012 = vmatpush.bf16.msra.mxu0 %v841
    %1013 = vmatpush.bf16.msra.mxu0 %v838
    %1014 = vmatpush.bf16.msra.mxu0 %v835
    %1015 = vmatmul.bf16.gmra.mxu0 %v337
    %v1016 = vpop.f32.mrf.mxu0
    %v1017 = vadd.f32 %v1003, %v1016
    %v1018 = vpop.f32.mrf.mxu0
    %v1019 = vadd.f32 %v1005, %v1018
    %1020 = vdwg.mxu0
    %1021 = vmatpush.bf16.msra.mxu0 %v880
    %1022 = vmatpush.bf16.msra.mxu0 %v877
    %1023 = vmatpush.bf16.msra.mxu0 %v874
    %1024 = vmatpush.bf16.msra.mxu0 %v871
    %1025 = vmatpush.bf16.msra.mxu0 %v868
    %1026 = vmatpush.bf16.msra.mxu0 %v865
    %1027 = vmatpush.bf16.msra.mxu0 %v862
    %1028 = vmatpush.bf16.msra.mxu0 %v859
    %1029 = vmatmul.bf16.gmra.mxu0 %v338
    %v1030 = vpop.f32.mrf.mxu0
    %v1031 = vadd.f32 %v1017, %v1030
    %v1032 = vpop.f32.mrf.mxu0
    %v1033 = vadd.f32 %v1019, %v1032
    %1034 = vdwg.mxu0
    %1035 = vmatpush.bf16.msra.mxu0 %v809
    %1036 = vmatpush.bf16.msra.mxu0 %v806
    %1037 = vmatpush.bf16.msra.mxu0 %v803
    %1038 = vmatpush.bf16.msra.mxu0 %v800
    %1039 = vmatpush.bf16.msra.mxu0 %v797
    %1040 = vmatpush.bf16.msra.mxu0 %v794
    %1041 = vmatpush.bf16.msra.mxu0 %v791
    %1042 = vmatpush.bf16.msra.mxu0 %v788
    %1043 = vmatmul.bf16.gmra.mxu0 %v335
    %v1044 = vpop.f32.mrf.mxu0
    %v1045 = vadd.f32 0.0, %v1044
    %v1046 = vpop.f32.mrf.mxu0
    %v1047 = vadd.f32 0.0, %v1046
    %1048 = vdwg.mxu0
    %1049 = vmatpush.bf16.msra.mxu0 %v833
    %1050 = vmatpush.bf16.msra.mxu0 %v830
    %1051 = vmatpush.bf16.msra.mxu0 %v827
    %1052 = vmatpush.bf16.msra.mxu0 %v824
    %1053 = vmatpush.bf16.msra.mxu0 %v821
    %1054 = vmatpush.bf16.msra.mxu0 %v818
    %1055 = vmatpush.bf16.msra.mxu0 %v815
    %1056 = vmatpush.bf16.msra.mxu0 %v812
    %1057 = vmatmul.bf16.gmra.mxu0 %v336
    %v1058 = vpop.f32.mrf.mxu0
    %v1059 = vadd.f32 %v1045, %v1058
    %v1060 = vpop.f32.mrf.mxu0
    %v1061 = vadd.f32 %v1047, %v1060
    %1062 = vdwg.mxu0
    %1063 = vmatpush.bf16.msra.mxu0 %v857
    %1064 = vmatpush.bf16.msra.mxu0 %v854
    %1065 = vmatpush.bf16.msra.mxu0 %v851
    %1066 = vmatpush.bf16.msra.mxu0 %v848
    %1067 = vmatpush.bf16.msra.mxu0 %v845
    %1068 = vmatpush.bf16.msra.mxu0 %v842
    %1069 = vmatpush.bf16.msra.mxu0 %v839
    %1070 = vmatpush.bf16.msra.mxu0 %v836
    %1071 = vmatmul.bf16.gmra.mxu0 %v337
    %v1072 = vpop.f32.mrf.mxu0
    %v1073 = vadd.f32 %v1059, %v1072
    %v1074 = vpop.f32.mrf.mxu0
    %v1075 = vadd.f32 %v1061, %v1074
    %1076 = vdwg.mxu0
    %1077 = vmatpush.bf16.msra.mxu0 %v881
    %1078 = vmatpush.bf16.msra.mxu0 %v878
    %1079 = vmatpush.bf16.msra.mxu0 %v875
    %1080 = vmatpush.bf16.msra.mxu0 %v872
    %1081 = vmatpush.bf16.msra.mxu0 %v869
    %1082 = vmatpush.bf16.msra.mxu0 %v866
    %1083 = vmatpush.bf16.msra.mxu0 %v863
    %1084 = vmatpush.bf16.msra.mxu0 %v860
    %1085 = vmatmul.bf16.gmra.mxu0 %v338
    %v1086 = vpop.f32.mrf.mxu0
    %v1087 = vadd.f32 %v1073, %v1086
    %v1088 = vpop.f32.mrf.mxu0
    %v1089 = vadd.f32 %v1075, %v1088
    %1090 = vdwg.mxu0
    %1091 = vmatpush.bf16.msra.mxu0 %v810
    %1092 = vmatpush.bf16.msra.mxu0 %v807
    %1093 = vmatpush.bf16.msra.mxu0 %v804
    %1094 = vmatpush.bf16.msra.mxu0 %v801
    %1095 = vmatpush.bf16.msra.mxu0 %v798
    %1096 = vmatpush.bf16.msra.mxu0 %v795
    %1097 = vmatpush.bf16.msra.mxu0 %v792
    %1098 = vmatpush.bf16.msra.mxu0 %v789
    %1099 = vmatmul.bf16.gmra.mxu0 %v335
    %v1100 = vpop.f32.mrf.mxu0
    %v1101 = vadd.f32 0.0, %v1100
    %v1102 = vpop.f32.mrf.mxu0
    %v1103 = vadd.f32 0.0, %v1102
    %1104 = vdwg.mxu0
    %1105 = vmatpush.bf16.msra.mxu0 %v834
    %1106 = vmatpush.bf16.msra.mxu0 %v831
    %1107 = vmatpush.bf16.msra.mxu0 %v828
    %1108 = vmatpush.bf16.msra.mxu0 %v825
    %1109 = vmatpush.bf16.msra.mxu0 %v822
    %1110 = vmatpush.bf16.msra.mxu0 %v819
    %1111 = vmatpush.bf16.msra.mxu0 %v816
    %1112 = vmatpush.bf16.msra.mxu0 %v813
    %1113 = vmatmul.bf16.gmra.mxu0 %v336
    %v1114 = vpop.f32.mrf.mxu0
    %v1115 = vadd.f32 %v1101, %v1114
    %v1116 = vpop.f32.mrf.mxu0
    %v1117 = vadd.f32 %v1103, %v1116
    %1118 = vdwg.mxu0
    %1119 = vmatpush.bf16.msra.mxu0 %v858
    %1120 = vmatpush.bf16.msra.mxu0 %v855
    %1121 = vmatpush.bf16.msra.mxu0 %v852
    %1122 = vmatpush.bf16.msra.mxu0 %v849
    %1123 = vmatpush.bf16.msra.mxu0 %v846
    %1124 = vmatpush.bf16.msra.mxu0 %v843
    %1125 = vmatpush.bf16.msra.mxu0 %v840
    %1126 = vmatpush.bf16.msra.mxu0 %v837
    %1127 = vmatmul.bf16.gmra.mxu0 %v337
    %v1128 = vpop.f32.mrf.mxu0
    %v1129 = vadd.f32 %v1115, %v1128
    %v1130 = vpop.f32.mrf.mxu0
    %v1131 = vadd.f32 %v1117, %v1130
    %1132 = vdwg.mxu0
    %1133 = vmatpush.bf16.msra.mxu0 %v882
    %1134 = vmatpush.bf16.msra.mxu0 %v879
    %1135 = vmatpush.bf16.msra.mxu0 %v876
    %1136 = vmatpush.bf16.msra.mxu0 %v873
    %1137 = vmatpush.bf16.msra.mxu0 %v870
    %1138 = vmatpush.bf16.msra.mxu0 %v867
    %1139 = vmatpush.bf16.msra.mxu0 %v864
    %1140 = vmatpush.bf16.msra.mxu0 %v861
    %1141 = vmatmul.bf16.gmra.mxu0 %v338
    %v1142 = vpop.f32.mrf.mxu0
    %v1143 = vadd.f32 %v1129, %v1142
    %v1144 = vpop.f32.mrf.mxu0
    %v1145 = vadd.f32 %v1131, %v1144
    %1146 = vdwg.mxu0
    %v1147 = vld [vmem:[%s5] sm:$0x7]
    %v1149 = vperm.slane %v1147, 0
    %v1150 = vperm.slane %v1147, 1
    %v1151 = vperm.slane %v1147, 2
    %v1155 = vmul.f32 %v1031, %v1149
    %v1156 = vmul.f32 %v1087, %v1150
    %v1157 = vmul.f32 %v1143, %v1151
    %v1158 = vmul.f32 %v1033, %v1149
    %v1159 = vmul.f32 %v1089, %v1150
    %v1160 = vmul.f32 %v1145, %v1151
    %v1161 = vld [vmem:[#allocation11] sm:$0x7]
    %v1163 = vperm.slane %v1161, 0
    %v1164 = vperm.slane %v1161, 1
    %v1165 = vperm.slane %v1161, 2
    %v1169 = vadd.f32 %v1155, %v1163
    %v1170 = vadd.f32 %v1156, %v1164
    %v1171 = vadd.f32 %v1157, %v1165
    %v1172 = vadd.f32 %v1158, %v1163
    %v1173 = vadd.f32 %v1159, %v1164
    %v1174 = vadd.f32 %v1160, %v1165
    %vm1175 = vcmp.gt.f32.partialorder %v1169, 0.0
    %vm1176 = vcmp.gt.f32.partialorder %v1170, 0.0
    %vm1177 = vcmp.gt.f32.partialorder %v1171, 0.0
    %vm1178 = vcmp.gt.f32.partialorder %v1172, 0.0
    %vm1179 = vcmp.gt.f32.partialorder %v1173, 0.0
    %vm1180 = vcmp.gt.f32.partialorder %v1174, 0.0
    %v1181 = vmin.f32 %v1169, 0.0
    %v1182 = vmin.f32 %v1170, 0.0
    %v1183 = vmin.f32 %v1171, 0.0
    %v1184 = vmin.f32 %v1172, 0.0
    %v1185 = vmin.f32 %v1173, 0.0
    %v1186 = vmin.f32 %v1174, 0.0
    %v1187 = vmul.f32 %v1181, 1.442695
    %v1188 = vpow.pop %v1187
    %v1189 = vmul.f32 %v1182, 1.442695
    %v1190 = vpow.pop %v1189
    %v1191 = vmul.f32 %v1183, 1.442695
    %v1192 = vpow.pop %v1191
    %v1193 = vmul.f32 %v1184, 1.442695
    %v1194 = vpow.pop %v1193
    %v1195 = vmul.f32 %v1185, 1.442695
    %v1196 = vpow.pop %v1195
    %v1197 = vmul.f32 %v1186, 1.442695
    %v1198 = vpow.pop %v1197
    %v1199 = vsub.f32 %v1188, 1.0
    %v1200 = vsub.f32 %v1190, 1.0
    %v1201 = vsub.f32 %v1192, 1.0
    %v1202 = vsub.f32 %v1194, 1.0
    %v1203 = vsub.f32 %v1196, 1.0
    %v1204 = vsub.f32 %v1198, 1.0
    %v1205 = vsel %vm1175, %v1169, %v1199
    %v1206 = vsel %vm1176, %v1170, %v1200
    %v1207 = vsel %vm1177, %v1171, %v1201
    %v1208 = vsel %vm1178, %v1172, %v1202
    %v1209 = vsel %vm1179, %v1173, %v1203
    %v1210 = vsel %vm1180, %v1174, %v1204
    %v1211 = vpack.c.bf16 %v1208, %v1205
    %v1212 = vpack.c.bf16 %v1209, %v1206
    %v1213 = vpack.c.bf16 %v1210, %v1207
    %v1214 = vld [vmem:[#allocation13] sm:$0xf]
    %v1215 = vld [vmem:[#allocation13 + $0x4] sm:$0xf]
    %v1216 = vld [vmem:[#allocation13 + $0x8] sm:$0xf]
    %v1217 = vld [vmem:[#allocation13 + $0xc] sm:$0xf]
    %v1218 = vld [vmem:[#allocation13 + $0x10] sm:$0xf]
    %v1219 = vld [vmem:[#allocation13 + $0x14] sm:$0xf]
    %v1220 = vld [vmem:[#allocation13 + $0x18] sm:$0xf]
    %v1221 = vld [vmem:[#allocation13 + $0x1c] sm:$0xf]
    %v1222 = vld [vmem:[#allocation13 + $0x20] sm:$0xf]
    %v1223 = vld [vmem:[#allocation13 + $0x24] sm:$0xf]
    %v1224 = vld [vmem:[#allocation13 + $0x28] sm:$0xf]
    %v1225 = vld [vmem:[#allocation13 + $0x2c] sm:$0xf]
    %v1226 = vld [vmem:[#allocation13 + $0x30] sm:$0xf]
    %v1227 = vld [vmem:[#allocation13 + $0x34] sm:$0xf]
    %v1228 = vld [vmem:[#allocation13 + $0x38] sm:$0xf]
    %v1229 = vld [vmem:[#allocation13 + $0x3c] sm:$0xf]
    %v1230 = vld [vmem:[#allocation13 + $0x40] sm:$0xf]
    %v1231 = vld [vmem:[#allocation13 + $0x44] sm:$0xf]
    %v1232 = vld [vmem:[#allocation13 + $0x48] sm:$0xf]
    %v1233 = vld [vmem:[#allocation13 + $0x4c] sm:$0xf]
    %v1234 = vld [vmem:[#allocation13 + $0x50] sm:$0xf]
    %v1235 = vld [vmem:[#allocation13 + $0x54] sm:$0xf]
    %v1236 = vld [vmem:[#allocation13 + $0x58] sm:$0xf]
    %v1237 = vld [vmem:[#allocation13 + $0x5c] sm:$0xf]
    %v1238 = vld [vmem:[#allocation13 + $0x60] sm:$0xf]
    %v1239 = vld [vmem:[#allocation13 + $0x64] sm:$0xf]
    %v1240 = vld [vmem:[#allocation13 + $0x68] sm:$0xf]
    %v1241 = vld [vmem:[#allocation13 + $0x6c] sm:$0xf]
    %v1242 = vld [vmem:[#allocation13 + $0x70] sm:$0xf]
    %v1243 = vld [vmem:[#allocation13 + $0x74] sm:$0xf]
    %v1244 = vld [vmem:[#allocation13 + $0x78] sm:$0xf]
    %v1245 = vld [vmem:[#allocation13 + $0x7c] sm:$0xf]
    %v1246 = vld [vmem:[#allocation13 + $0x80] sm:$0xf]
    %v1247 = vld [vmem:[#allocation13 + $0x84] sm:$0xf]
    %v1248 = vld [vmem:[#allocation13 + $0x88] sm:$0xf]
    %v1249 = vld [vmem:[#allocation13 + $0x8c] sm:$0xf]
    %v1250 = vld [vmem:[#allocation13 + $0x90] sm:$0xf]
    %v1251 = vld [vmem:[#allocation13 + $0x94] sm:$0xf]
    %v1252 = vld [vmem:[#allocation13 + $0x98] sm:$0xf]
    %v1253 = vld [vmem:[#allocation13 + $0x9c] sm:$0xf]
    %v1254 = vld [vmem:[#allocation13 + $0xa0] sm:$0xf]
    %v1255 = vld [vmem:[#allocation13 + $0xa4] sm:$0xf]
    %v1256 = vld [vmem:[#allocation13 + $0xa8] sm:$0xf]
    %v1257 = vld [vmem:[#allocation13 + $0xac] sm:$0xf]
    %v1258 = vld [vmem:[#allocation13 + $0xb0] sm:$0xf]
    %v1259 = vld [vmem:[#allocation13 + $0xb4] sm:$0xf]
    %v1260 = vld [vmem:[#allocation13 + $0xb8] sm:$0xf]
    %v1261 = vld [vmem:[#allocation13 + $0xbc] sm:$0xf]
    %v1310 = vunpack.c.l.b16 %v1214
    %v1311 = vunpack.c.l.b16 %v1215
    %v1312 = vunpack.c.l.b16 %v1216
    %v1313 = vunpack.c.l.b16 %v1217
    %v1314 = vunpack.c.l.b16 %v1218
    %v1315 = vunpack.c.l.b16 %v1219
    %v1316 = vunpack.c.l.b16 %v1220
    %v1317 = vunpack.c.l.b16 %v1221
    %v1318 = vunpack.c.l.b16 %v1222
    %v1319 = vunpack.c.l.b16 %v1223
    %v1320 = vunpack.c.l.b16 %v1224
    %v1321 = vunpack.c.l.b16 %v1225
    %v1322 = vunpack.c.l.b16 %v1226
    %v1323 = vunpack.c.l.b16 %v1227
    %v1324 = vunpack.c.l.b16 %v1228
    %v1325 = vunpack.c.l.b16 %v1229
    %v1326 = vunpack.c.l.b16 %v1230
    %v1327 = vunpack.c.l.b16 %v1231
    %v1328 = vunpack.c.l.b16 %v1232
    %v1329 = vunpack.c.l.b16 %v1233
    %v1330 = vunpack.c.l.b16 %v1234
    %v1331 = vunpack.c.l.b16 %v1235
    %v1332 = vunpack.c.l.b16 %v1236
    %v1333 = vunpack.c.l.b16 %v1237
    %v1334 = vunpack.c.l.b16 %v1238
    %v1335 = vunpack.c.l.b16 %v1239
    %v1336 = vunpack.c.l.b16 %v1240
    %v1337 = vunpack.c.l.b16 %v1241
    %v1338 = vunpack.c.l.b16 %v1242
    %v1339 = vunpack.c.l.b16 %v1243
    %v1340 = vunpack.c.l.b16 %v1244
    %v1341 = vunpack.c.l.b16 %v1245
    %v1342 = vunpack.c.l.b16 %v1246
    %v1343 = vunpack.c.l.b16 %v1247
    %v1344 = vunpack.c.l.b16 %v1248
    %v1345 = vunpack.c.l.b16 %v1249
    %v1346 = vunpack.c.l.b16 %v1250
    %v1347 = vunpack.c.l.b16 %v1251
    %v1348 = vunpack.c.l.b16 %v1252
    %v1349 = vunpack.c.l.b16 %v1253
    %v1350 = vunpack.c.l.b16 %v1254
    %v1351 = vunpack.c.l.b16 %v1255
    %v1352 = vunpack.c.l.b16 %v1256
    %v1353 = vunpack.c.l.b16 %v1257
    %v1354 = vunpack.c.l.b16 %v1258
    %v1355 = vunpack.c.l.b16 %v1259
    %v1356 = vunpack.c.l.b16 %v1260
    %v1357 = vunpack.c.l.b16 %v1261
    %v1358 = vpack.c.b16 %v1311, %v1310
    %v1359 = vpack.c.b16 %v1313, %v1312
    %v1360 = vpack.c.b16 %v1315, %v1314
    %v1361 = vpack.c.b16 %v1317, %v1316
    %v1362 = vpack.c.b16 %v1319, %v1318
    %v1363 = vpack.c.b16 %v1321, %v1320
    %v1364 = vpack.c.b16 %v1323, %v1322
    %v1365 = vpack.c.b16 %v1325, %v1324
    %v1366 = vpack.c.b16 %v1327, %v1326
    %v1367 = vpack.c.b16 %v1329, %v1328
    %v1368 = vpack.c.b16 %v1331, %v1330
    %v1369 = vpack.c.b16 %v1333, %v1332
    %v1370 = vpack.c.b16 %v1335, %v1334
    %v1371 = vpack.c.b16 %v1337, %v1336
    %v1372 = vpack.c.b16 %v1339, %v1338
    %v1373 = vpack.c.b16 %v1341, %v1340
    %v1374 = vpack.c.b16 %v1343, %v1342
    %v1375 = vpack.c.b16 %v1345, %v1344
    %v1376 = vpack.c.b16 %v1347, %v1346
    %v1377 = vpack.c.b16 %v1349, %v1348
    %v1378 = vpack.c.b16 %v1351, %v1350
    %v1379 = vpack.c.b16 %v1353, %v1352
    %v1380 = vpack.c.b16 %v1355, %v1354
    %v1381 = vpack.c.b16 %v1357, %v1356
    %1406 = vmatpush.bf16.msra.mxu0 %v1365
    %1407 = vmatpush.bf16.msra.mxu0 %v1364
    %1408 = vmatpush.bf16.msra.mxu0 %v1363
    %1409 = vmatpush.bf16.msra.mxu0 %v1362
    %1410 = vmatpush.bf16.msra.mxu0 %v1361
    %1411 = vmatpush.bf16.msra.mxu0 %v1360
    %1412 = vmatpush.bf16.msra.mxu0 %v1359
    %1413 = vmatpush.bf16.msra.mxu0 %v1358
    %1414 = vmatmul.bf16.gmra.mxu0 %v1211
    %v1415 = vpop.f32.mrf.mxu0
    %v1416 = vadd.f32 0.0, %v1415
    %v1417 = vpop.f32.mrf.mxu0
    %v1418 = vadd.f32 0.0, %v1417
    %1419 = vdwg.mxu0
    %1420 = vmatpush.bf16.msra.mxu0 %v1373
    %1421 = vmatpush.bf16.msra.mxu0 %v1372
    %1422 = vmatpush.bf16.msra.mxu0 %v1371
    %1423 = vmatpush.bf16.msra.mxu0 %v1370
    %1424 = vmatpush.bf16.msra.mxu0 %v1369
    %1425 = vmatpush.bf16.msra.mxu0 %v1368
    %1426 = vmatpush.bf16.msra.mxu0 %v1367
    %1427 = vmatpush.bf16.msra.mxu0 %v1366
    %1428 = vmatmul.bf16.gmra.mxu0 %v1212
    %v1429 = vpop.f32.mrf.mxu0
    %v1430 = vadd.f32 %v1416, %v1429
    %v1431 = vpop.f32.mrf.mxu0
    %v1432 = vadd.f32 %v1418, %v1431
    %1433 = vdwg.mxu0
    %1434 = vmatpush.bf16.msra.mxu0 %v1381
    %1435 = vmatpush.bf16.msra.mxu0 %v1380
    %1436 = vmatpush.bf16.msra.mxu0 %v1379
    %1437 = vmatpush.bf16.msra.mxu0 %v1378
    %1438 = vmatpush.bf16.msra.mxu0 %v1377
    %1439 = vmatpush.bf16.msra.mxu0 %v1376
    %1440 = vmatpush.bf16.msra.mxu0 %v1375
    %1441 = vmatpush.bf16.msra.mxu0 %v1374
    %1442 = vmatmul.bf16.gmra.mxu0 %v1213
    %v1443 = vpop.f32.mrf.mxu0
    %v1444 = vadd.f32 %v1430, %v1443
    %v1445 = vpop.f32.mrf.mxu0
    %v1446 = vadd.f32 %v1432, %v1445
    %1447 = vdwg.mxu0
    %v1448 = vld [vmem:[%s8] sm:$0x1]
    %v1450 = vperm.slane %v1448, 0
    %v1452 = vmul.f32 %v1444, %v1450
    %v1453 = vmul.f32 %v1446, %v1450
    %v1454 = vld [vmem:[%s9] sm:$0x1]
    %v1456 = vperm.slane %v1454, 0
    %v1458 = vadd.f32 %v1452, %v1456
    %v1459 = vadd.f32 %v1453, %v1456
    %v1460 = vtanh.pop %v1458
    %v1461 = vtanh.pop %v1459
    %v1462 = vpack.c.bf16 %v1460, %v1460
    %v1463 = vpack.c.bf16 %v1461, %v1461
    %1464 = vst [vmem:[#allocation14] sm:$0xf] %v1462
    %1465 = vst [vmem:[#allocation14 + $0x4] sm:$0xf] %v1463
    // Predicated region
    $region70: #{tpu_custom_call.1} parent=1 // pred_check
      _
    $region71: #{tpu_custom_call.1} parent=1 // pred_check_branch
      %1467 = sbr.rel (0) target = $region73
    $region72: #{tpu_custom_call.1} parent=1 // pred_region
      %1469 = vsyncadd [#allocation4], 0
      %s1470 = sshll.u32 [#allocation14], 4
      %s1471 = int_to_ptr.vmem [resolvable:$true] %s1470
      %s1472 = sshll.u32 %s10, 4
      %s1473 = int_to_ptr.hbm [resolvable:$true] %s1472
      %1478 = dma.vmem_to_hbm [thread:$0]  %s1471, 128, %s1473, [#allocation4], 64, 64, 4
    $region73: #{tpu_custom_call.1} parent=1 // pred_fallthru
      _
    // Predicated region
    $region74: #{tpu_custom_call.1} parent=1 // pred_check
      _
    $region75: #{tpu_custom_call.1} parent=1 // pred_check_branch
      %1480 = sbr.rel (0) target = $region77
    $region76: #{tpu_custom_call.1} parent=1 // pred_region
      %1482 = dma.done [#allocation4], 128
    $region77: #{tpu_custom_call.1} parent=1 // pred_fallthru
      _
    %1483 = vsyncpa [#allocation3], 1
    %1484 = vsyncpa [#allocation6], 1
    %1485 = vsyncpa [#allocation9], 1
    %1486 = vsyncpa [#allocation12], 1
    %1487 = vsyncpa [#allocation4], 1

</llo_original>
